<compile_context>
chip_gen: v5e
topology: v5e:2x2
jax: 0.10.0
libtpu: 0.0.40
codegen_flags: <defaults>
</compile_context>

<pallas_src>
import functools

import jax
import jax.numpy as jnp
from jax.experimental import pallas as pl
from jax.experimental.pallas import tpu as pltpu

LANE = 128


def _round_up(x, m):
    return ((x + m - 1) // m) * m


def _vmem_estimate(bm, hp, tn, wbytes):
    """Rough VMEM bytes for one grid step (incl. double buffers + temporaries)."""
    f32 = 4
    return (2 * bm * hp * f32        # x tile, double-buffered (f32)
            + 2 * bm * tn * f32      # out tile, double-buffered (f32)
            + hp * hp * wbytes       # W_ih, single-buffered
            + 2 * hp * tn * wbytes   # W_ho tile, double-buffered over j
            + hp * f32               # threshold row
            + bm * hp * wbytes       # spikes_h scratch
            + 2 * bm * hp * f32)     # hidden / spikes_in temporaries


def spike_kernel(x_ref, w_ih_ref, w_ho_ref, thr_ref, out_ref, spikes_h_ref,
                 *, mxu_dtype):
    # x_ref:        (bm, Hp)    batch tile (f32)
    # w_ih_ref:     (Hp, Hp)    resident, mxu_dtype
    # w_ho_ref:     (Hp, tn)    output-column tile, mxu_dtype
    # thr_ref:      (1, Hp)     threshold row (f32)
    # out_ref:      (bm, tn)    f32, lane-dense
    # spikes_h_ref: (bm, Hp)    VMEM scratch, persists across the j axis
    j = pl.program_id(1)

    @pl.when(j == 0)
    def _():
        thr = thr_ref[...]
        # Input spiking: compare in f32 on the VPU, cast straight to the MXU
        # operand dtype (0/1 is exact in any dtype).
        spikes_in = (x_ref[...] > thr).astype(mxu_dtype)
        hidden = jnp.dot(spikes_in, w_ih_ref[...],
                         preferred_element_type=jnp.float32)
        # Hidden spiking (f32 compare), stored once and reused for every
        # output-column tile of this batch tile.
        spikes_h_ref[...] = (hidden > thr).astype(mxu_dtype)

    # Output projection on the MXU; full-lane store into the padded out tile.
    out_ref[...] = jnp.dot(spikes_h_ref[...], w_ho_ref[...],
                           preferred_element_type=jnp.float32)


def spike_nn_forward(x, w_ih, w_ho, threshold, *, bm=None, tn=None,
                     mxu_dtype=jnp.float32):
    B, D_in = x.shape
    D_in_w, H = w_ih.shape
    H_w, D_out = w_ho.shape
    assert D_in_w == D_in and H_w == H
    # PyTorch broadcast of (x > threshold) requires input_dim == hidden_dim.
    assert D_in == H, "SpikeNNModel forward requires input_dim == hidden_dim"

    wbytes = jnp.dtype(mxu_dtype).itemsize
    sub = 16 if wbytes < 4 else 8  # sublane alignment for the spike operand

    # --- pad lane/contraction dims to full 128-lane vregs / full MXU width ---
    Hp = _round_up(H, LANE)
    D_out_p = _round_up(D_out, LANE)
    if tn is None:
        tn = min(D_out_p, 512)
    tn = _round_up(tn, LANE)
    D_out_p = _round_up(D_out_p, tn)

    # --- batch tile: sublane-aligned, >= 2 grid steps when B allows ---------
    if bm is None:
        bm = min(512, _round_up(max(B // 2, sub), sub))
    bm = max(sub, _round_up(bm, sub))
    while _vmem_estimate(bm, Hp, tn, wbytes) > (40 << 20) and bm > sub:
        bm = max(sub, bm // 2)
    Bp = _round_up(B, bm)

    vmem_limit = int(min(100 << 20,
                         max(32 << 20, 2 * _vmem_estimate(bm, Hp, tn, wbytes))))

    # --- zero-pad operands (padded rows/cols contribute nothing) ------------
    if (Bp, Hp) != (B, D_in):
        x = jnp.pad(x, ((0, Bp - B), (0, Hp - D_in)))
    if Hp != H:
        w_ih = jnp.pad(w_ih, ((0, Hp - D_in), (0, Hp - H)))
    if (Hp, D_out_p) != (H, D_out):
        w_ho = jnp.pad(w_ho, ((0, Hp - H), (0, D_out_p - D_out)))
    thr2d = jnp.pad(threshold, (0, Hp - H)).reshape(1, Hp).astype(jnp.float32)

    # One-time weight cast in the wrapper (no per-step in-kernel convert,
    # halves weight DMA bytes when mxu_dtype is bf16).
    w_ih = w_ih.astype(mxu_dtype)
    w_ho = w_ho.astype(mxu_dtype)

    grid = (Bp // bm, D_out_p // tn)

    out_padded = pl.pallas_call(
        functools.partial(spike_kernel, mxu_dtype=mxu_dtype),
        out_shape=jax.ShapeDtypeStruct((Bp, D_out_p), jnp.float32),
        grid_spec=pltpu.PrefetchScalarGridSpec(
            num_scalar_prefetch=0,
            grid=grid,
            in_specs=[
                pl.BlockSpec((bm, Hp), lambda i, j: (i, 0)),      # x tile
                pl.BlockSpec((Hp, Hp), lambda i, j: (0, 0),       # W_ih (resident)
                             pipeline_mode=pl.Buffered(1)),
                pl.BlockSpec((Hp, tn), lambda i, j: (0, j)),      # W_ho col tile
                pl.BlockSpec((1, Hp), lambda i, j: (0, 0),        # threshold row
                             pipeline_mode=pl.Buffered(1)),
            ],
            out_specs=pl.BlockSpec((bm, tn), lambda i, j: (i, j)),
            scratch_shapes=[pltpu.VMEM((bm, Hp), mxu_dtype)],     # hidden spikes
        ),
        compiler_params=pltpu.CompilerParams(
            dimension_semantics=("parallel", "arbitrary"),
            vmem_limit_bytes=vmem_limit),
    )(x, w_ih, w_ho, thr2d)

    # Drop batch / output-column padding.
    return out_padded[:B, :D_out]


def spike_nn_reference(x, w_ih, w_ho, threshold):
    spikes_in = jnp.where(x > threshold, 1.0, 0.0)
    hidden = spikes_in @ w_ih
    spikes_h = jnp.where(hidden > threshold, 1.0, 0.0)
    return spikes_h @ w_ho


if __name__ == "__main__":
    # NOTE: the PyTorch forward broadcasts `x > threshold` with a hidden_dim
    # threshold, so the module only works when input_dim == hidden_dim.
    batch = 16
    input_dim = 32
    hidden_dim = 32
    output_dim = 16

    key = jax.random.PRNGKey(0)
    kx, kw1, kw2, kt = jax.random.split(key, 4)

    # Deterministic synthetic parameters (torch.randn-style N(0,1) init).
    x = jax.random.normal(kx, (batch, input_dim), dtype=jnp.float32)
    w_ih = jax.random.normal(kw1, (input_dim, hidden_dim), dtype=jnp.float32)
    w_ho = jax.random.normal(kw2, (hidden_dim, output_dim), dtype=jnp.float32)
    threshold = jax.random.normal(kt, (hidden_dim,), dtype=jnp.float32)

    # Exact f32 MXU path: must match the reference bit-for-bit (within fp tol).
    out = spike_nn_forward(x, w_ih, w_ho, threshold)
    out = jax.block_until_ready(out)
    ref = spike_nn_reference(x, w_ih, w_ho, threshold)
    assert out.shape == (batch, output_dim)
    assert jnp.allclose(out, ref, atol=1e-5, rtol=1e-5), "mismatch vs reference"

    # Fast bf16 MXU path (recommended default on v5e/v6e/v7x). Not bit-exact:
    # a hidden value within bf16 rounding of its threshold can flip a spike,
    # so only sanity-check shape / finiteness here.
    out_bf16 = spike_nn_forward(x, w_ih, w_ho, threshold,
                                mxu_dtype=jnp.bfloat16)
    out_bf16 = jax.block_until_ready(out_bf16)
    assert out_bf16.shape == (batch, output_dim)
    assert bool(jnp.all(jnp.isfinite(out_bf16)))

    print("KERNEL_OK")
</pallas_src>

<mosaic_0001>
module attributes {stable_mosaic.version = 11 : i64} {
  func.func @spike_kernel(%arg0: i32, %arg1: i32, %arg2: memref<8x128xf32, #tpu.memory_space<vmem>>, %arg3: memref<128x128xf32, #tpu.memory_space<vmem>>, %arg4: memref<128x128xf32, #tpu.memory_space<vmem>>, %arg5: memref<1x128xf32, #tpu.memory_space<vmem>>, %arg6: memref<8x128xf32, #tpu.memory_space<vmem>>, %arg7: memref<8x128xf32, #tpu.memory_space<vmem>>) attributes {dimension_semantics = [#tpu.dimension_semantics<parallel>, #tpu.dimension_semantics<arbitrary>], iteration_bounds = array<i64: 2, 1>, scalar_prefetch = 0 : i64, scratch_operands = 1 : i64, tpu.core_type = #tpu.core_type<tc>, window_params = [{transform_indices = @transform_0, window_bounds = array<i64: 8, 128>}, {pipeline_mode = #tpu.pipeline_mode<synchronous>, transform_indices = @transform_1, window_bounds = array<i64: 128, 128>}, {transform_indices = @transform_2, window_bounds = array<i64: 128, 128>}, {pipeline_mode = #tpu.pipeline_mode<synchronous>, transform_indices = @transform_3, window_bounds = array<i64: 1, 128>}, {transform_indices = @transform_4, window_bounds = array<i64: 8, 128>}]} {
    %c0_i32 = arith.constant 0 : i32
    %0 = arith.cmpi eq, %arg1, %c0_i32 : i32
    %1 = arith.extui %0 : i1 to i32
    %c0_i32_0 = arith.constant 0 : i32
    %2 = arith.cmpi ne, %1, %c0_i32_0 : i32
    scf.if %2 {
      %c0_6 = arith.constant 0 : index
      %c0_7 = arith.constant 0 : index
      %7 = vector.load %arg5[%c0_6, %c0_7] : memref<1x128xf32, #tpu.memory_space<vmem>>, vector<1x128xf32>
      %c0_8 = arith.constant 0 : index
      %c0_9 = arith.constant 0 : index
      %8 = vector.load %arg2[%c0_8, %c0_9] : memref<8x128xf32, #tpu.memory_space<vmem>>, vector<8x128xf32>
      %9 = vector.broadcast %7 : vector<1x128xf32> to vector<8x128xf32>
      %10 = arith.cmpf ogt, %8, %9 : vector<8x128xf32>
      %11 = arith.extui %10 : vector<8x128xi1> to vector<8x128xi32>
      %12 = arith.sitofp %11 : vector<8x128xi32> to vector<8x128xf32>
      %c0_10 = arith.constant 0 : index
      %c0_11 = arith.constant 0 : index
      %13 = vector.load %arg3[%c0_10, %c0_11] : memref<128x128xf32, #tpu.memory_space<vmem>>, vector<128x128xf32>
      %cst_12 = arith.constant dense<0.000000e+00> : vector<8x128xf32>
      %14 = tpu.matmul %12, %13, %cst_12 {dimension_numbers = #tpu.dot_dimension_numbers<[1], [0], [0], [1], [0, 0, 1, 1], [], []>} : vector<8x128xf32>, vector<128x128xf32>, vector<8x128xf32> -> vector<8x128xf32>
      %15 = vector.broadcast %7 : vector<1x128xf32> to vector<8x128xf32>
      %16 = arith.cmpf ogt, %14, %15 : vector<8x128xf32>
      %17 = arith.extui %16 : vector<8x128xi1> to vector<8x128xi32>
      %18 = arith.sitofp %17 : vector<8x128xi32> to vector<8x128xf32>
      %c0_13 = arith.constant 0 : index
      %c0_14 = arith.constant 0 : index
      %19 = vector.load %arg7[%c0_13, %c0_14] : memref<8x128xf32, #tpu.memory_space<vmem>>, vector<8x128xf32>
      tpu.vector_store %arg7[%c0_13, %c0_14], %18 {strides = array<i32>} : memref<8x128xf32, #tpu.memory_space<vmem>>, vector<8x128xf32>,
    } else {
    }
    %c0 = arith.constant 0 : index
    %c0_1 = arith.constant 0 : index
    %3 = vector.load %arg7[%c0, %c0_1] : memref<8x128xf32, #tpu.memory_space<vmem>>, vector<8x128xf32>
    %c0_2 = arith.constant 0 : index
    %c0_3 = arith.constant 0 : index
    %4 = vector.load %arg4[%c0_2, %c0_3] : memref<128x128xf32, #tpu.memory_space<vmem>>, vector<128x128xf32>
    %cst = arith.constant dense<0.000000e+00> : vector<8x128xf32>
    %5 = tpu.matmul %3, %4, %cst {dimension_numbers = #tpu.dot_dimension_numbers<[1], [0], [0], [1], [0, 0, 1, 1], [], []>} : vector<8x128xf32>, vector<128x128xf32>, vector<8x128xf32> -> vector<8x128xf32>
    %c0_4 = arith.constant 0 : index
    %c0_5 = arith.constant 0 : index
    %6 = vector.load %arg6[%c0_4, %c0_5] : memref<8x128xf32, #tpu.memory_space<vmem>>, vector<8x128xf32>
    tpu.vector_store %arg6[%c0_4, %c0_5], %5 {strides = array<i32>} : memref<8x128xf32, #tpu.memory_space<vmem>>, vector<8x128xf32>,
    return
  }
  func.func @transform_0(%arg0: i32, %arg1: i32) -> (i32, i32) {
    %c0_i32 = arith.constant 0 : i32
    %c0_i32_0 = arith.constant 0 : i32
    return %arg0, %c0_i32 : i32, i32
  }
  func.func @transform_1(%arg0: i32, %arg1: i32) -> (i32, i32) {
    %c0_i32 = arith.constant 0 : i32
    %c0_i32_0 = arith.constant 0 : i32
    %c0_i32_1 = arith.constant 0 : i32
    return %c0_i32, %c0_i32_0 : i32, i32
  }
  func.func @transform_2(%arg0: i32, %arg1: i32) -> (i32, i32) {
    %c0_i32 = arith.constant 0 : i32
    %c0_i32_0 = arith.constant 0 : i32
    return %c0_i32, %arg1 : i32, i32
  }
  func.func @transform_3(%arg0: i32, %arg1: i32) -> (i32, i32) {
    %c0_i32 = arith.constant 0 : i32
    %c0_i32_0 = arith.constant 0 : i32
    %c0_i32_1 = arith.constant 0 : i32
    return %c0_i32, %c0_i32_0 : i32, i32
  }
  func.func @transform_4(%arg0: i32, %arg1: i32) -> (i32, i32) {
    %c0_i32 = arith.constant 0 : i32
    return %arg0, %arg1 : i32, i32
  }
}

</mosaic_0001>

<llo_original>
// kernel: tpu_custom_call.1
$region0: #{tpu_custom_call.1}
  #allocation0 [shape = 'u32[]', space=smem, size = 0x4, offset = 0x4, fixed_abs, tag = 'smem constant byte address 0x4 - core index']
  #allocation1 [shape = 'u32[72,128]{1,0:T(1,128)}', space=vmem, size = 0x9000, scoped, tag = 'internal scratch']
  #allocation2 [shape = 'f32[8,128]{1,0:T(8,128)}', space=vmem, size = 0x1000, scoped, tag = 'scratch operand']
  %s0 = inlined_call_operand.hbm [shape: f32[16,128], index: 0, kind: input, shape index: {}]
  %s1 = inlined_call_operand.hbm [shape: f32[128,128], index: 1, kind: input, shape index: {}]
  %s2 = inlined_call_operand.hbm [shape: f32[128,128], index: 2, kind: input, shape index: {}]
  %s3 = inlined_call_operand.vmem [shape: f32[1,128], index: 3, kind: input, shape index: {}]
  %s4 = inlined_call_operand.hbm [shape: f32[16,128], index: 4, kind: output, shape index: {}]
  %s5 = sld [smem:[#allocation0]]
  $region65: #{tpu_custom_call.1} parent=0
    _
  %s7 = ssub.s32 1, %s5
  %s8 = scalar_select 0, %s7, %s5
  $region1: #{tpu_custom_call.1} parent=0
    #allocation3 [shape = 'u8[8192]{0}', space=vmem, size = 0x2000, scoped, tag = 'input window, operand 0']
    #allocation4 [shape = 's32[2]{0}', space=sflag, size = 0x8, scoped, tag = 'scoped memory for tpu_custom_call.1']
    #allocation5 [shape = 's32[2]{0}', space=sflag, size = 0x8, scoped, tag = 'scoped memory for tpu_custom_call.1']
    #allocation6 [shape = 'u8[65536]{0}', space=vmem, size = 0x10000, scoped, tag = 'input window, operand 1, single buffered']
    #allocation7 [shape = 's32[1]{0}', space=sflag, size = 0x4, scoped, tag = 'scoped memory for tpu_custom_call.1']
    #allocation8 [shape = 'u8[65536]{0}', space=vmem, size = 0x10000, scoped, tag = 'input window, operand 2, single buffered']
    #allocation9 [shape = 'u8[8192]{0}', space=vmem, size = 0x2000, scoped, tag = 'output window, operand 0']
    %9 = vsyncpa [#allocation4], 0
    %s10 = scalar_lea.sflag [#allocation4], 1
    %11 = vsyncpa %s10, 0
    %12 = vsyncpa [#allocation7], 0
    %13 = vsyncpa [#allocation5], 0
    %s14 = scalar_lea.sflag [#allocation5], 1
    %15 = vsyncpa %s14, 0
    loop: start=0, step=1, limit=4
    $region2: #{tpu_custom_call.1} parent=1 // loop_pre_header
      _
    $region3: #{tpu_custom_call.1} parent=1 // loop_header
      %s17 = sphi 0, %s21
      %p18 = scmp.ge.s32.totalorder %s17, 4
      %s24 = sphi 0, %s36
      %s25 = sphi 0, %s32
      %s26 = sphi 0, %s24
      %s27 = sphi 0, %s25
      %s28 = sphi 0, %s26
      %s29 = sphi 0, %s27
      %s39 = sphi 0, %s41
      %s42 = sphi 0, %s39
      %s43 = sphi 0, %s42
      %s59 = sphi 0, %s43
      %s63 = sphi 0, %s63
      %s65 = sphi 0, %s63
      %s66 = sphi 0, %s65
      %s80 = sphi 0, %s66
      %s86 = sphi 0, %s88
      %s89 = sphi 0, %s86
      %s90 = sphi 0, %s89
      %s106 = sphi 0, %s90
      %s110 = sphi 0, %s110
      %s112 = sphi 0, %s110
      %s113 = sphi 0, %s112
      %s127 = sphi 0, %s113
      %s135 = sphi 0, %s137
      %s138 = sphi 0, %s135
      %s139 = sphi 0, %s138
      %s155 = sphi 0, %s139
    $region4: #{tpu_custom_call.1} parent=1 // loop_header_branch
      %20 = sbr.rel (%p18) target = $region8
    $region5: #{tpu_custom_call.1} parent=1 // loop_body
      %s22 = ssub.s32 %s17, 1
      %s23 = ssub.s32 %s17, 2
      %s30 = sadd.s32 1, %s25
      %p31 = scmp.ge.s32.totalorder %s30, 1
      %s32 = scalar_select %p31, 0, %s30
      %s33 = sadd.s32 1, %s24
      %s34 = scalar_select %p31, %s33, %s24
      %p35 = scmp.ge.s32.totalorder %s34, 2
      %s36 = scalar_select %p35, 0, %s34
      %s37 = ssub.s32 %s24, %s36
      %p38 = scmp.eq.s32.totalorder %s37, 0
      %s40 = sadd.s32 %s39, 1
      %s41 = scalar_select %p38, %s39, %s40
      %p44 = pneg %p38
      %p45 = scmp.eq.s32.totalorder %s17, 1
      %p46 = por %p44, %p45
      %p47 = scmp.ne.s32.totalorder %s39, %s42
      %p48 = scmp.eq.s32.totalorder %s17, 0
      %p49 = por %p47, %p48
      %p50 = scmp.ne.s32.totalorder %s39, %s42
      %p51 = scmp.eq.s32.totalorder %s22, 1
      %p52 = por %p50, %p51
      %p53 = scmp.ne.s32.totalorder %s42, %s43
      %p54 = scmp.eq.s32.totalorder %s22, 0
      %p55 = por %p53, %p54
      %p56 = scmp.ne.s32.totalorder %s42, %s43
      %p57 = scmp.eq.s32.totalorder %s23, 1
      %p58 = por %p56, %p57
      %p60 = scmp.ne.s32.totalorder %s43, %s59
      %p61 = scmp.eq.s32.totalorder %s23, 0
      %p62 = por %p60, %p61
      %s64 = sadd.s32 %s63, 1
      %p67 = scmp.eq.s32.totalorder %s17, 1
      %p68 = scmp.ne.s32.totalorder %s63, %s65
      %p69 = scmp.eq.s32.totalorder %s17, 0
      %p70 = por %p68, %p69
      %p71 = scmp.ne.s32.totalorder %s63, %s65
      %p72 = scmp.eq.s32.totalorder %s22, 1
      %p73 = por %p71, %p72
      %p74 = scmp.ne.s32.totalorder %s65, %s66
      %p75 = scmp.eq.s32.totalorder %s22, 0
      %p76 = por %p74, %p75
      %p77 = scmp.ne.s32.totalorder %s65, %s66
      %p78 = scmp.eq.s32.totalorder %s23, 1
      %p79 = por %p77, %p78
      %p81 = scmp.ne.s32.totalorder %s66, %s80
      %p82 = scmp.eq.s32.totalorder %s23, 0
      %p83 = por %p81, %p82
      %s84 = ssub.s32 %s25, %s32
      %p85 = scmp.eq.s32.totalorder %s84, 0
      %s87 = sadd.s32 %s86, 1
      %s88 = scalar_select %p85, %s86, %s87
      %p91 = pneg %p85
      %p92 = scmp.eq.s32.totalorder %s17, 1
      %p93 = por %p91, %p92
      %p94 = scmp.ne.s32.totalorder %s86, %s89
      %p95 = scmp.eq.s32.totalorder %s17, 0
      %p96 = por %p94, %p95
      %p97 = scmp.ne.s32.totalorder %s86, %s89
      %p98 = scmp.eq.s32.totalorder %s22, 1
      %p99 = por %p97, %p98
      %p100 = scmp.ne.s32.totalorder %s89, %s90
      %p101 = scmp.eq.s32.totalorder %s22, 0
      %p102 = por %p100, %p101
      %p103 = scmp.ne.s32.totalorder %s89, %s90
      %p104 = scmp.eq.s32.totalorder %s23, 1
      %p105 = por %p103, %p104
      %p107 = scmp.ne.s32.totalorder %s90, %s106
      %p108 = scmp.eq.s32.totalorder %s23, 0
      %p109 = por %p107, %p108
      %s111 = sadd.s32 %s110, 1
      %p114 = scmp.eq.s32.totalorder %s17, 1
      %p115 = scmp.ne.s32.totalorder %s110, %s112
      %p116 = scmp.eq.s32.totalorder %s17, 0
      %p117 = por %p115, %p116
      %p118 = scmp.ne.s32.totalorder %s110, %s112
      %p119 = scmp.eq.s32.totalorder %s22, 1
      %p120 = por %p118, %p119
      %p121 = scmp.ne.s32.totalorder %s112, %s113
      %p122 = scmp.eq.s32.totalorder %s22, 0
      %p123 = por %p121, %p122
      %p124 = scmp.ne.s32.totalorder %s112, %s113
      %p125 = scmp.eq.s32.totalorder %s23, 1
      %p126 = por %p124, %p125
      %p128 = scmp.ne.s32.totalorder %s113, %s127
      %p129 = scmp.eq.s32.totalorder %s23, 0
      %p130 = por %p128, %p129
      %s131 = ssub.s32 %s24, %s36
      %s132 = ssub.s32 %s25, %s32
      %s133 = sor.u32 %s131, %s132
      %p134 = scmp.eq.s32.totalorder %s133, 0
      %s136 = sadd.s32 %s135, 1
      %s137 = scalar_select %p134, %s135, %s136
      %p140 = pneg %p134
      %p141 = scmp.eq.s32.totalorder %s17, 1
      %p142 = por %p140, %p141
      %p143 = scmp.ne.s32.totalorder %s135, %s138
      %p144 = scmp.eq.s32.totalorder %s17, 0
      %p145 = por %p143, %p144
      %p146 = scmp.ne.s32.totalorder %s135, %s138
      %p147 = scmp.eq.s32.totalorder %s22, 1
      %p148 = por %p146, %p147
      %p149 = scmp.ne.s32.totalorder %s138, %s139
      %p150 = scmp.eq.s32.totalorder %s22, 0
      %p151 = por %p149, %p150
      %p152 = scmp.ne.s32.totalorder %s138, %s139
      %p153 = scmp.eq.s32.totalorder %s23, 1
      %p154 = por %p152, %p153
      %p156 = scmp.ne.s32.totalorder %s139, %s155
      %p157 = scmp.eq.s32.totalorder %s23, 0
      %p158 = por %p156, %p157
      %p159 = scmp.le.s32.totalorder 1, %s17
      %p160 = scmp.lt.s32.totalorder %s17, 3
      %p161 = pnand %p159, %p160
      %p162 = pneg %p161
      // Predicated region
      $region9: #{tpu_custom_call.1} parent=5 // pred_check
        _
      $region10: #{tpu_custom_call.1} parent=5 // pred_check_branch
        %164 = sbr.rel (%p161) target = $region12
      $region11: #{tpu_custom_call.1} parent=5 // pred_region
        %s165 = ssub.s32 %s17, 1
        // Predicated region
        $region13: #{tpu_custom_call.1} parent=11 // pred_check
          %p166 = pneg %p76
        $region14: #{tpu_custom_call.1} parent=11 // pred_check_branch
          %168 = sbr.rel (%p166) target = $region16
        $region15: #{tpu_custom_call.1} parent=11 // pred_region
          %170 = vsyncadd [#allocation7], 0
          %s171 = sshll.u32 %s1, 4
          %s172 = int_to_ptr.hbm [resolvable:$true] %s171
          %s173 = sshll.u32 [#allocation6], 4
          %s174 = int_to_ptr.vmem [resolvable:$true] %s173
          %179 = dma.hbm_to_vmem [thread:$0]  %s172, 2048, %s174, [#allocation7], 128, 128, 8
        $region16: #{tpu_custom_call.1} parent=11 // pred_fallthru
          _
        // Predicated region
        $region17: #{tpu_custom_call.1} parent=11 // pred_check
          %p180 = pneg %p102
        $region18: #{tpu_custom_call.1} parent=11 // pred_check_branch
          %182 = sbr.rel (%p180) target = $region20
        $region19: #{tpu_custom_call.1} parent=11 // pred_region
          %184 = vsyncadd [#allocation7], 0
          %s185 = smul.addr %s27, 8
          %s186 = scalar_lea.hbm %s2, %s185
          %s187 = sshll.u32 %s186, 4
          %s188 = int_to_ptr.hbm [resolvable:$true] %s187
          %s189 = sshll.u32 [#allocation8], 4
          %s190 = int_to_ptr.vmem [resolvable:$true] %s189
          %195 = dma.hbm_to_vmem [thread:$0]  %s188, 2048, %s190, [#allocation7], 128, 128, 8
        $region20: #{tpu_custom_call.1} parent=11 // pred_fallthru
          _
        // Predicated region
        $region21: #{tpu_custom_call.1} parent=11 // pred_check
          %p196 = pneg %p123
        $region22: #{tpu_custom_call.1} parent=11 // pred_check_branch
          %198 = sbr.rel (%p196) target = $region24
        $region23: #{tpu_custom_call.1} parent=11 // pred_region
          _
        $region24: #{tpu_custom_call.1} parent=11 // pred_fallthru
          _
      $region12: #{tpu_custom_call.1} parent=5 // pred_fallthru
        _
      %p199 = scmp.lt.s32.totalorder %s17, 2
      // Predicated region
      $region25: #{tpu_custom_call.1} parent=5 // pred_check
        %p200 = pneg %p199
      $region26: #{tpu_custom_call.1} parent=5 // pred_check_branch
        %202 = sbr.rel (%p200) target = $region28
      $region27: #{tpu_custom_call.1} parent=5 // pred_region
        // Predicated region
        $region29: #{tpu_custom_call.1} parent=27 // pred_check
          %p203 = pneg %p49
        $region30: #{tpu_custom_call.1} parent=27 // pred_check_branch
          %205 = sbr.rel (%p203) target = $region32
        $region31: #{tpu_custom_call.1} parent=27 // pred_region
          %s206 = sand.u32 %s39, 1
          %s207 = scalar_lea.sflag [#allocation4], %s206
          %s208 = sand.u32 %s39, 1
          %s209 = smul.addr %s208, 8
          %s210 = scalar_lea.vmem [#allocation3], %s209
          %212 = vsyncadd %s207, 0
          %s213 = smul.addr %s24, 8
          %s214 = scalar_lea.hbm %s0, %s213
          %s216 = sshll.u32 %s214, 4
          %s217 = int_to_ptr.hbm [resolvable:$true] %s216
          %s218 = sshll.u32 %s210, 4
          %s219 = int_to_ptr.vmem [resolvable:$true] %s218
          %221 = dma.hbm_to_vmem [thread:$0]  %s217, 128, %s219, %s207
        $region32: #{tpu_custom_call.1} parent=27 // pred_fallthru
          _
      $region28: #{tpu_custom_call.1} parent=5 // pred_fallthru
        _
      %p222 = scmp.le.s32.totalorder 1, %s17
      %p223 = scmp.lt.s32.totalorder %s17, 3
      %p224 = pnand %p222, %p223
      %p225 = pneg %p224
      // Predicated region
      $region33: #{tpu_custom_call.1} parent=5 // pred_check
        _
      $region34: #{tpu_custom_call.1} parent=5 // pred_check_branch
        %227 = sbr.rel (%p224) target = $region36
      $region35: #{tpu_custom_call.1} parent=5 // pred_region
        %s228 = ssub.s32 %s17, 1
        %s229 = sand.u32 %s42, 1
        %s230 = scalar_lea.sflag [#allocation4], %s229
        %s231 = sand.u32 %s42, 1
        %s232 = smul.addr %s231, 8
        %s233 = scalar_lea.vmem [#allocation3], %s232
        // Predicated region
        $region37: #{tpu_custom_call.1} parent=35 // pred_check
          %p234 = pneg %p55
        $region38: #{tpu_custom_call.1} parent=35 // pred_check_branch
          %236 = sbr.rel (%p234) target = $region40
        $region39: #{tpu_custom_call.1} parent=35 // pred_region
          %238 = dma.done %s230, 128
        $region40: #{tpu_custom_call.1} parent=35 // pred_fallthru
          _
        // Predicated region
        $region41: #{tpu_custom_call.1} parent=35 // pred_check
          %p239 = pneg %p76
        $region42: #{tpu_custom_call.1} parent=35 // pred_check_branch
          %241 = sbr.rel (%p239) target = $region44
        $region43: #{tpu_custom_call.1} parent=35 // pred_region
          %243 = dma.done [#allocation7], 2048
        $region44: #{tpu_custom_call.1} parent=35 // pred_fallthru
          _
        // Predicated region
        $region45: #{tpu_custom_call.1} parent=35 // pred_check
          %p244 = pneg %p102
        $region46: #{tpu_custom_call.1} parent=35 // pred_check_branch
          %246 = sbr.rel (%p244) target = $region48
        $region47: #{tpu_custom_call.1} parent=35 // pred_region
          %248 = dma.done [#allocation7], 2048
        $region48: #{tpu_custom_call.1} parent=35 // pred_fallthru
          _
        %s249 = sand.u32 %s42, 1
        %s250 = scalar_lea.sflag [#allocation4], %s249
        %s251 = sand.u32 %s42, 1
        %s252 = smul.addr %s251, 8
        %s253 = scalar_lea.vmem [#allocation3], %s252
        %p254 = pneg %p55
        %p255 = pneg %p52
        %p256 = pneg %p76
        %p257 = pneg %p73
        %p258 = pneg %p102
        %p259 = pneg %p99
        %p260 = pneg %p123
        %p261 = pneg %p120
        %p262 = pneg %p151
        %p263 = pneg %p148
        %s264 = sand.u32 %s138, 1
        %s265 = scalar_lea.sflag [#allocation5], %s264
        %s266 = sand.u32 %s138, 1
        %s267 = smul.addr %s266, 8
        %s268 = scalar_lea.vmem [#allocation9], %s267
        %p269 = scmp.eq.s32.totalorder %s27, 0
        // Predicated region
        $region49: #{tpu_custom_call.1} parent=35 // pred_check
          %p270 = pneg %p269
        $region50: #{tpu_custom_call.1} parent=35 // pred_check_branch
          %272 = sbr.rel (%p270) target = $region52
        $region51: #{tpu_custom_call.1} parent=35 // pred_region
          %v273 = vld [vmem:[%s3] sm:$0x1]
          %v274 = vld [vmem:[%s233] sm:$0xff]
          %v276 = vperm.slane %v273, 0
          %vm278 = vcmp.gt.f32.partialorder %v274, %v276
          %v279 = vsel %vm278, 1, 0
          %v280 = vcvt.s32.f32 %v279
          %v281 = vld [vmem:[#allocation6] sm:$0xff]
          %v282 = vld [vmem:[#allocation6 + $0x8] sm:$0xff]
          %v283 = vld [vmem:[#allocation6 + $0x10] sm:$0xff]
          %v284 = vld [vmem:[#allocation6 + $0x18] sm:$0xff]
          %v285 = vld [vmem:[#allocation6 + $0x20] sm:$0xff]
          %v286 = vld [vmem:[#allocation6 + $0x28] sm:$0xff]
          %v287 = vld [vmem:[#allocation6 + $0x30] sm:$0xff]
          %v288 = vld [vmem:[#allocation6 + $0x38] sm:$0xff]
          %v289 = vld [vmem:[#allocation6 + $0x40] sm:$0xff]
          %v290 = vld [vmem:[#allocation6 + $0x48] sm:$0xff]
          %v291 = vld [vmem:[#allocation6 + $0x50] sm:$0xff]
          %v292 = vld [vmem:[#allocation6 + $0x58] sm:$0xff]
          %v293 = vld [vmem:[#allocation6 + $0x60] sm:$0xff]
          %v294 = vld [vmem:[#allocation6 + $0x68] sm:$0xff]
          %v295 = vld [vmem:[#allocation6 + $0x70] sm:$0xff]
          %v296 = vld [vmem:[#allocation6 + $0x78] sm:$0xff]
          %297 = vmatpush.msra.mxu0 %v296
          %298 = vmatpush.msra.mxu0 %v295
          %299 = vmatpush.msra.mxu0 %v294
          %300 = vmatpush.msra.mxu0 %v293
          %301 = vmatpush.msra.mxu0 %v292
          %302 = vmatpush.msra.mxu0 %v291
          %303 = vmatpush.msra.mxu0 %v290
          %304 = vmatpush.msra.mxu0 %v289
          %305 = vmatpush.msra.mxu0 %v288
          %306 = vmatpush.msra.mxu0 %v287
          %307 = vmatpush.msra.mxu0 %v286
          %308 = vmatpush.msra.mxu0 %v285
          %309 = vmatpush.msra.mxu0 %v284
          %310 = vmatpush.msra.mxu0 %v283
          %311 = vmatpush.msra.mxu0 %v282
          %312 = vmatpush.msra.mxu0 %v281
          %313 = vmatmul.f32.gmra.mxu0 %v280
          %v314 = vpop.f32.mrf.mxu0
          %v315 = vadd.f32 0.0, %v314
          %316 = vdwg.mxu0
          %vm317 = vcmp.gt.f32.partialorder %v315, %v276
          %v318 = vsel %vm317, 1, 0
          %v319 = vcvt.s32.f32 %v318
          %320 = vst [vmem:[#allocation2] sm:$0xff] %v319
        $region52: #{tpu_custom_call.1} parent=35 // pred_fallthru
          _
        %v321 = vld [vmem:[#allocation2] sm:$0xff]
        %v322 = vld [vmem:[#allocation8] sm:$0xff]
        %v323 = vld [vmem:[#allocation8 + $0x8] sm:$0xff]
        %v324 = vld [vmem:[#allocation8 + $0x10] sm:$0xff]
        %v325 = vld [vmem:[#allocation8 + $0x18] sm:$0xff]
        %v326 = vld [vmem:[#allocation8 + $0x20] sm:$0xff]
        %v327 = vld [vmem:[#allocation8 + $0x28] sm:$0xff]
        %v328 = vld [vmem:[#allocation8 + $0x30] sm:$0xff]
        %v329 = vld [vmem:[#allocation8 + $0x38] sm:$0xff]
        %v330 = vld [vmem:[#allocation8 + $0x40] sm:$0xff]
        %v331 = vld [vmem:[#allocation8 + $0x48] sm:$0xff]
        %v332 = vld [vmem:[#allocation8 + $0x50] sm:$0xff]
        %v333 = vld [vmem:[#allocation8 + $0x58] sm:$0xff]
        %v334 = vld [vmem:[#allocation8 + $0x60] sm:$0xff]
        %v335 = vld [vmem:[#allocation8 + $0x68] sm:$0xff]
        %v336 = vld [vmem:[#allocation8 + $0x70] sm:$0xff]
        %v337 = vld [vmem:[#allocation8 + $0x78] sm:$0xff]
        %338 = vmatpush.msra.mxu0 %v337
        %339 = vmatpush.msra.mxu0 %v336
        %340 = vmatpush.msra.mxu0 %v335
        %341 = vmatpush.msra.mxu0 %v334
        %342 = vmatpush.msra.mxu0 %v333
        %343 = vmatpush.msra.mxu0 %v332
        %344 = vmatpush.msra.mxu0 %v331
        %345 = vmatpush.msra.mxu0 %v330
        %346 = vmatpush.msra.mxu0 %v329
        %347 = vmatpush.msra.mxu0 %v328
        %348 = vmatpush.msra.mxu0 %v327
        %349 = vmatpush.msra.mxu0 %v326
        %350 = vmatpush.msra.mxu0 %v325
        %351 = vmatpush.msra.mxu0 %v324
        %352 = vmatpush.msra.mxu0 %v323
        %353 = vmatpush.msra.mxu0 %v322
        %354 = vmatmul.f32.gmra.mxu0 %v321
        %v355 = vpop.f32.mrf.mxu0
        %v356 = vadd.f32 0.0, %v355
        %357 = vdwg.mxu0
        %358 = vst [vmem:[%s268] sm:$0xff] %v356
        %s359 = sand.u32 %s138, 1
        %s360 = scalar_lea.sflag [#allocation5], %s359
        %s361 = sand.u32 %s138, 1
        %s362 = smul.addr %s361, 8
        %s363 = scalar_lea.vmem [#allocation9], %s362
        // Predicated region
        $region53: #{tpu_custom_call.1} parent=35 // pred_check
          %p364 = pneg %p148
        $region54: #{tpu_custom_call.1} parent=35 // pred_check_branch
          %366 = sbr.rel (%p364) target = $region56
        $region55: #{tpu_custom_call.1} parent=35 // pred_region
          %368 = vsyncadd %s360, 0
          %s369 = sadd.s32 %s27, %s26
          %s370 = smul.addr %s369, 8
          %s371 = scalar_lea.hbm %s4, %s370
          %s373 = sshll.u32 %s363, 4
          %s374 = int_to_ptr.vmem [resolvable:$true] %s373
          %s375 = sshll.u32 %s371, 4
          %s376 = int_to_ptr.hbm [resolvable:$true] %s375
          %378 = dma.vmem_to_hbm [thread:$0]  %s374, 128, %s376, %s360
        $region56: #{tpu_custom_call.1} parent=35 // pred_fallthru
          _
      $region36: #{tpu_custom_call.1} parent=5 // pred_fallthru
        _
      %p379 = scmp.le.s32.totalorder 2, %s17
      // Predicated region
      $region57: #{tpu_custom_call.1} parent=5 // pred_check
        %p380 = pneg %p379
      $region58: #{tpu_custom_call.1} parent=5 // pred_check_branch
        %382 = sbr.rel (%p380) target = $region60
      $region59: #{tpu_custom_call.1} parent=5 // pred_region
        %s383 = ssub.s32 %s17, 2
        // Predicated region
        $region61: #{tpu_custom_call.1} parent=59 // pred_check
          %p384 = pneg %p154
        $region62: #{tpu_custom_call.1} parent=59 // pred_check_branch
          %386 = sbr.rel (%p384) target = $region64
        $region63: #{tpu_custom_call.1} parent=59 // pred_region
          %s387 = sand.u32 %s139, 1
          %s388 = scalar_lea.sflag [#allocation5], %s387
          %s389 = sand.u32 %s139, 1
          %s390 = smul.addr %s389, 8
          %s391 = scalar_lea.vmem [#allocation9], %s390
          %393 = dma.done %s388, 128
        $region64: #{tpu_custom_call.1} parent=59 // pred_fallthru
          _
      $region60: #{tpu_custom_call.1} parent=5 // pred_fallthru
        _
    $region6: #{tpu_custom_call.1} parent=1 // loop_footer
      %s21 = sadd.s32 1, %s17
    $region7: #{tpu_custom_call.1} parent=1 // loop_footer_branch
      %16 = sbr.rel target = $region3
    $region8: #{tpu_custom_call.1} parent=1 // loop_exit
      _
    %394 = vsyncpa [#allocation4], 1
    %s395 = scalar_lea.sflag [#allocation4], 1
    %396 = vsyncpa %s395, 1
    %397 = vsyncpa [#allocation7], 1
    %398 = vsyncpa [#allocation5], 1
    %s399 = scalar_lea.sflag [#allocation5], 1
    %400 = vsyncpa %s399, 1

</llo_original>
